<compile_context>
chip_gen: v7x
topology: tpu7x:2x2x1
jax: 0.10.0
libtpu: 0.0.40
codegen_flags: <defaults>
</compile_context>

<pallas_src>
import functools

import jax
import jax.numpy as jnp
from jax import lax
from jax.experimental import pallas as pl
from jax.experimental.pallas import tpu as pltpu


def make_mlp_kernel(num_hidden_layers: int):
    """Fused MLP kernel for a fixed number of hidden layers.

    Ref order (L = num_hidden_layers):
      L > 0 : x (B,1), w_hidden (L,N,N), rows (L+4,N), out (1,B)
      L == 0: x (B,1),                   rows (4,N),   out (1,B)

    rows layout: row 0 = w_in, row 1 = b_in, rows 2..L+1 = hidden biases,
                 row L+2 = w_out (output weight row), row L+3 = b_out (broadcast).
    """
    L = num_hidden_layers

    def kernel(*refs):
        if L > 0:
            x_ref, w_h_ref, rows_ref, o_ref = refs
        else:
            x_ref, rows_ref, o_ref = refs
            w_h_ref = None

        w_in = rows_ref[0:1, :]   # (1, N)
        b_in = rows_ref[1:2, :]   # (1, N)

        # First layer: Linear(1, nodes) + ReLU.
        # x is (B, 1), w_in is (1, N)  ->  VPU broadcast multiply, no K=1 matmul.
        h = jnp.maximum(x_ref[...] * w_in + b_in, 0.0)          # (B, N)

        # Hidden layers: Linear(nodes, nodes) + ReLU, f32-accumulated on the MXU.
        for l in range(L):
            w = w_h_ref[l]                                       # (N, N)
            b = rows_ref[2 + l:3 + l, :]                         # (1, N)
            h = jnp.maximum(
                jnp.dot(h, w, preferred_element_type=jnp.float32) + b, 0.0
            )

        # Output layer: Linear(nodes, 1), written lane-dense as (1, B).
        w_out = rows_ref[2 + L:3 + L, :]                         # (1, N)
        b_out = rows_ref[3 + L:4 + L, 0:1]                       # (1, 1)
        # Contract the node axis of w_out (1,N) and h (B,N) -> (1, B): batch lands
        # on the lane axis, so the store is an unmasked lane-dense vst.
        o = lax.dot_general(
            w_out, h,
            dimension_numbers=(((1,), (1,)), ((), ())),
            preferred_element_type=jnp.float32,
        )                                                        # (1, B)
        o_ref[...] = o + b_out

    return kernel


def init_params(key, nodes: int, layers: int):
    """Deterministic PyTorch-style uniform(-1/sqrt(fan_in), 1/sqrt(fan_in)) init.

    Weights stored transposed as (in_features, out_features); output-layer weight
    stored as a (1, nodes) row, output bias as (1, 1).
    Returns the flat (unpacked) parameter list used by the pure-JAX reference.
    """
    def uniform(k, shape, fan_in):
        bound = 1.0 / jnp.sqrt(jnp.float32(fan_in))
        return jax.random.uniform(k, shape, dtype=jnp.float32,
                                  minval=-bound, maxval=bound)

    params = []
    key, kw, kb = jax.random.split(key, 3)
    params += [uniform(kw, (1, nodes), 1), uniform(kb, (1, nodes), 1)]       # in
    for _ in range(layers):
        key, kw, kb = jax.random.split(key, 3)
        params += [uniform(kw, (nodes, nodes), nodes),
                   uniform(kb, (1, nodes), nodes)]                           # hidden
    key, kw, kb = jax.random.split(key, 3)
    params += [uniform(kw, (1, nodes), nodes), uniform(kb, (1, 1), nodes)]   # out
    return params


def pack_params(params, nodes: int, layers: int):
    """Pack the flat param list into the two kernel operands (w_hidden, rows)."""
    w_in, b_in = params[0], params[1]
    hidden_ws = [params[2 + 2 * l] for l in range(layers)]
    hidden_bs = [params[3 + 2 * l] for l in range(layers)]
    w_out, b_out = params[-2], params[-1]

    if layers > 0:
        w_hidden = jnp.stack(hidden_ws, axis=0)                  # (layers, N, N)
    else:
        w_hidden = jnp.zeros((0, nodes, nodes), jnp.float32)

    rows = jnp.concatenate(
        [w_in, b_in] + hidden_bs + [w_out, jnp.broadcast_to(b_out, (1, nodes))],
        axis=0,
    )                                                            # (layers+4, N)
    return w_hidden, rows


@functools.partial(jax.jit, static_argnames=("layers",))
def regression_model_forward(x, w_hidden, rows, *, layers: int):
    batch = x.shape[0]
    kernel = make_mlp_kernel(layers)

    vmem_spec = pl.BlockSpec(memory_space=pltpu.MemorySpace.VMEM)
    inputs = (x, w_hidden, rows) if layers > 0 else (x, rows)

    out = pl.pallas_call(
        kernel,
        out_shape=jax.ShapeDtypeStruct((1, batch), jnp.float32),  # lane-dense
        in_specs=[vmem_spec] * len(inputs),
        out_specs=vmem_spec,
    )(*inputs)
    return out.reshape(batch, 1)   # back to PyTorch's (N, out_features) layout


def reference_forward(x, params, layers: int):
    """Pure-JAX reference reproducing the PyTorch forward semantics."""
    w_in, b_in = params[0], params[1]
    h = jnp.maximum(x @ w_in + b_in, 0.0)
    for l in range(layers):
        w, b = params[2 + 2 * l], params[3 + 2 * l]
        h = jnp.maximum(h @ w + b, 0.0)
    w_out, b_out = params[-2], params[-1]
    return h @ w_out.T + b_out


if __name__ == "__main__":
    # hparams = {'nodes': 32, 'layers': 2}
    nodes = 32
    layers = 2
    batch = 8

    key = jax.random.PRNGKey(0)
    key, kx, kp = jax.random.split(key, 3)

    x = jax.random.normal(kx, (batch, 1), dtype=jnp.float32)
    params = init_params(kp, nodes, layers)
    w_hidden, rows = pack_params(params, nodes, layers)

    out = regression_model_forward(x, w_hidden, rows, layers=layers)
    out = jax.block_until_ready(out)

    ref = reference_forward(x, params, layers)
    assert out.shape == (batch, 1), out.shape
    assert jnp.allclose(out, ref, atol=1e-5, rtol=1e-5), (out, ref)

    print("KERNEL_OK")
</pallas_src>

<mosaic_0001>
module attributes {stable_mosaic.version = 11 : i64} {
  func.func @kernel(%arg0: memref<8x1xf32, #tpu.memory_space<vmem>>, %arg1: memref<2x32x32xf32, #tpu.memory_space<vmem>>, %arg2: memref<6x32xf32, #tpu.memory_space<vmem>>, %arg3: memref<1x8xf32, #tpu.memory_space<vmem>>) attributes {dimension_semantics = [], scalar_prefetch = 0 : i64, scratch_operands = 0 : i64, tpu.core_type = #tpu.core_type<tc>} {
    %c0 = arith.constant 0 : index
    %c0_0 = arith.constant 0 : index
    %0 = vector.load %arg2[%c0, %c0_0] : memref<6x32xf32, #tpu.memory_space<vmem>>, vector<1x32xf32>
    %c1 = arith.constant 1 : index
    %c0_1 = arith.constant 0 : index
    %1 = vector.load %arg2[%c1, %c0_1] : memref<6x32xf32, #tpu.memory_space<vmem>>, vector<1x32xf32>
    %c0_2 = arith.constant 0 : index
    %c0_3 = arith.constant 0 : index
    %2 = vector.load %arg0[%c0_2, %c0_3] : memref<8x1xf32, #tpu.memory_space<vmem>>, vector<8x1xf32>
    %3 = vector.broadcast %2 : vector<8x1xf32> to vector<8x32xf32>
    %4 = vector.broadcast %0 : vector<1x32xf32> to vector<8x32xf32>
    %5 = arith.mulf %3, %4 : vector<8x32xf32>
    %6 = vector.broadcast %1 : vector<1x32xf32> to vector<8x32xf32>
    %7 = arith.addf %5, %6 : vector<8x32xf32>
    %cst = arith.constant 0.000000e+00 : f32
    %8 = vector.broadcast %cst : f32 to vector<8x32xf32>
    %9 = arith.maximumf %7, %8 : vector<8x32xf32>
    %c0_4 = arith.constant 0 : index
    %c0_5 = arith.constant 0 : index
    %c0_6 = arith.constant 0 : index
    %10 = vector.load %arg1[%c0_4, %c0_5, %c0_6] : memref<2x32x32xf32, #tpu.memory_space<vmem>>, vector<1x32x32xf32>
    %11 = vector.shape_cast %10 : vector<1x32x32xf32> to vector<32x32xf32>
    %c2 = arith.constant 2 : index
    %c0_7 = arith.constant 0 : index
    %12 = vector.load %arg2[%c2, %c0_7] : memref<6x32xf32, #tpu.memory_space<vmem>>, vector<1x32xf32>
    %cst_8 = arith.constant dense<0.000000e+00> : vector<8x32xf32>
    %13 = tpu.matmul %9, %11, %cst_8 {dimension_numbers = #tpu.dot_dimension_numbers<[1], [0], [0], [1], [0, 0, 1, 1], [], []>} : vector<8x32xf32>, vector<32x32xf32>, vector<8x32xf32> -> vector<8x32xf32>
    %14 = vector.broadcast %12 : vector<1x32xf32> to vector<8x32xf32>
    %15 = arith.addf %13, %14 : vector<8x32xf32>
    %cst_9 = arith.constant 0.000000e+00 : f32
    %16 = vector.broadcast %cst_9 : f32 to vector<8x32xf32>
    %17 = arith.maximumf %15, %16 : vector<8x32xf32>
    %c1_10 = arith.constant 1 : index
    %c0_11 = arith.constant 0 : index
    %c0_12 = arith.constant 0 : index
    %18 = vector.load %arg1[%c1_10, %c0_11, %c0_12] : memref<2x32x32xf32, #tpu.memory_space<vmem>>, vector<1x32x32xf32>
    %19 = vector.shape_cast %18 : vector<1x32x32xf32> to vector<32x32xf32>
    %c3 = arith.constant 3 : index
    %c0_13 = arith.constant 0 : index
    %20 = vector.load %arg2[%c3, %c0_13] : memref<6x32xf32, #tpu.memory_space<vmem>>, vector<1x32xf32>
    %cst_14 = arith.constant dense<0.000000e+00> : vector<8x32xf32>
    %21 = tpu.matmul %17, %19, %cst_14 {dimension_numbers = #tpu.dot_dimension_numbers<[1], [0], [0], [1], [0, 0, 1, 1], [], []>} : vector<8x32xf32>, vector<32x32xf32>, vector<8x32xf32> -> vector<8x32xf32>
    %22 = vector.broadcast %20 : vector<1x32xf32> to vector<8x32xf32>
    %23 = arith.addf %21, %22 : vector<8x32xf32>
    %cst_15 = arith.constant 0.000000e+00 : f32
    %24 = vector.broadcast %cst_15 : f32 to vector<8x32xf32>
    %25 = arith.maximumf %23, %24 : vector<8x32xf32>
    %c4 = arith.constant 4 : index
    %c0_16 = arith.constant 0 : index
    %26 = vector.load %arg2[%c4, %c0_16] : memref<6x32xf32, #tpu.memory_space<vmem>>, vector<1x32xf32>
    %c5 = arith.constant 5 : index
    %c0_17 = arith.constant 0 : index
    %27 = vector.load %arg2[%c5, %c0_17] : memref<6x32xf32, #tpu.memory_space<vmem>>, vector<1x1xf32>
    %cst_18 = arith.constant dense<0.000000e+00> : vector<1x8xf32>
    %28 = tpu.matmul %26, %25, %cst_18 {dimension_numbers = #tpu.dot_dimension_numbers<[1], [1], [0], [0], [0, 0, 1, 0], [], []>} : vector<1x32xf32>, vector<8x32xf32>, vector<1x8xf32> -> vector<1x8xf32>
    %29 = vector.broadcast %27 : vector<1x1xf32> to vector<1x8xf32>
    %30 = arith.addf %28, %29 : vector<1x8xf32>
    %c0_19 = arith.constant 0 : index
    %c0_20 = arith.constant 0 : index
    %31 = vector.load %arg3[%c0_19, %c0_20] : memref<1x8xf32, #tpu.memory_space<vmem>>, vector<1x8xf32>
    tpu.vector_store %arg3[%c0_19, %c0_20], %30 {strides = array<i32>} : memref<1x8xf32, #tpu.memory_space<vmem>>, vector<1x8xf32>,
    return
  }
}

</mosaic_0001>

<llo_original>
// kernel: regression_model_forward.1
$region0: #{regression_model_forward.1}
  #allocation0 [shape = 'u32[]', space=smem, size = 0x4, offset = 0x4, fixed_abs, tag = 'smem constant byte address 0x4 - core index']
  #allocation1 [shape = 'u32[144,128]{1,0:T(1,128)}', space=vmem, size = 0x12000, scoped, tag = 'internal scratch']
  %s0 = inlined_call_operand.vmem [shape: f32[8,1], index: 0, kind: input, shape index: {}]
  %s1 = inlined_call_operand.hbm [shape: f32[2,32,32], index: 1, kind: input, shape index: {}]
  %s2 = inlined_call_operand.vmem [shape: f32[6,32], index: 2, kind: input, shape index: {}]
  %s3 = inlined_call_operand.hbm [shape: f32[1,8], index: 3, kind: output, shape index: {}]
  %s4 = sld [smem:[#allocation0]]
  $region26: #{regression_model_forward.1} parent=0
    _
  %s6 = ssub.s32 1, %s4
  %s7 = scalar_select 0, %s6, %s4
  $region1: #{regression_model_forward.1} parent=0
    #allocation2 [shape = 'u8[32768]{0}', space=vmem, size = 0x8000, scoped, tag = 'input window, operand 1, single buffered']
    #allocation3 [shape = 's32[1]{0}', space=sflag, size = 0x4, scoped, tag = 'scoped memory for regression_model_forward.1']
    #allocation4 [shape = 's32[1]{0}', space=sflag, size = 0x4, scoped, tag = 'scoped memory for regression_model_forward.1']
    #allocation5 [shape = 'u8[512]{0}', space=vmem, size = 0x400, scoped, tag = 'output window, operand 0, single buffered']
    %8 = vsyncpa [#allocation3], 0
    %9 = vsyncpa [#allocation4], 0
    // Predicated region
    $region2: #{regression_model_forward.1} parent=1 // pred_check
      _
    $region3: #{regression_model_forward.1} parent=1 // pred_check_branch
      %11 = sbr.rel (0) target = $region5
    $region4: #{regression_model_forward.1} parent=1 // pred_region
      _
    $region5: #{regression_model_forward.1} parent=1 // pred_fallthru
      _
    // Predicated region
    $region6: #{regression_model_forward.1} parent=1 // pred_check
      _
    $region7: #{regression_model_forward.1} parent=1 // pred_check_branch
      %13 = sbr.rel (0) target = $region9
    $region8: #{regression_model_forward.1} parent=1 // pred_region
      %s15 = ssub.s32 1024, 1024
      %16 = vsyncadd [#allocation3], %s15
      %s17 = sshll.u32 [#allocation2], 4
      %s18 = int_to_ptr.vmem [resolvable:$true] %s17
      %23 = dma.hbm_to_vmem [thread:$0]  %s1, 1024, %s18, [#allocation3], 128, 128, 8
    $region9: #{regression_model_forward.1} parent=1 // pred_fallthru
      _
    // Predicated region
    $region10: #{regression_model_forward.1} parent=1 // pred_check
      _
    $region11: #{regression_model_forward.1} parent=1 // pred_check_branch
      %25 = sbr.rel (0) target = $region13
    $region12: #{regression_model_forward.1} parent=1 // pred_region
      _
    $region13: #{regression_model_forward.1} parent=1 // pred_fallthru
      _
    // Predicated region
    $region14: #{regression_model_forward.1} parent=1 // pred_check
      _
    $region15: #{regression_model_forward.1} parent=1 // pred_check_branch
      %27 = sbr.rel (0) target = $region17
    $region16: #{regression_model_forward.1} parent=1 // pred_region
      %28 = dma.done [#allocation3], 1024
    $region17: #{regression_model_forward.1} parent=1 // pred_fallthru
      _
    %v29 = vld [vmem:[%s2] sm:$0x1]
    %v30 = vld [vmem:[%s2 + $0x1] sm:$0x1]
    %v31 = vld [vmem:[%s0] sm:$0xff]
    %33 = vset.pattern.permute.xlu0 0
    %34 = vperm.xlu0 %33, %v31
    %v35 = vpop.permute.xlu0 %34
    %v37 = vlaneseq
    %v38 = vshrl.u32 %v37, 7
    %v39 = vsub.s32 0, %v38
    %v40 = vrot.slane %v29, %v39
    %v41 = vmul.f32 %v35, %v40
    %v42 = vlaneseq
    %v43 = vshrl.u32 %v42, 7
    %v44 = vsub.s32 0, %v43
    %v45 = vrot.slane %v30, %v44
    %v46 = vadd.f32 %v41, %v45
    %v47 = vmax.f32 %v46, 0.0
    %v48 = vld [vmem:[#allocation2] sm:$0xff]
    %v49 = vld [vmem:[#allocation2 + $0x8] sm:$0xff]
    %v50 = vld [vmem:[#allocation2 + $0x10] sm:$0xff]
    %v51 = vld [vmem:[#allocation2 + $0x18] sm:$0xff]
    %v52 = vld [vmem:[%s2 + $0x2] sm:$0x1]
    %v53 = vlaneseq
    %v54 = vshrl.u32 %v53, 7
    %v55 = vsub.s32 0, %v54
    %v56 = vrot.slane %v52, %v55
    %vm57 = vcmask 261120
    %v59 = vsel %vm57, %v47, 0
    %61 = vmatprep.subr.mxu0 0.0
    %62 = vmatpush1.msra.mxu0 %v48
    %63 = vmatprep.subr.mxu0 0.0
    %64 = vmatpush1.msra.mxu0 %v49
    %65 = vmatprep.subr.mxu0 0.0
    %66 = vmatpush1.msra.mxu0 %v50
    %67 = vmatprep.subr.mxu0 0.0
    %68 = vmatpush1.msra.mxu0 %v51
    %69 = vmatprep.subr.mxu0 0.0
    %70 = vmatpush1.msra.mxu0 0.0
    %71 = vmatprep.subr.mxu0 0.0
    %72 = vmatpush1.msra.mxu0 0.0
    %73 = vmatprep.subr.mxu0 0.0
    %74 = vmatpush1.msra.mxu0 0.0
    %75 = vmatprep.subr.mxu0 0.0
    %76 = vmatpush1.msra.mxu0 0.0
    %77 = vmatprep.subr.mxu0 0.0
    %78 = vmatpush1.msra.mxu0 0.0
    %79 = vmatprep.subr.mxu0 0.0
    %80 = vmatpush1.msra.mxu0 0.0
    %81 = vmatprep.subr.mxu0 0.0
    %82 = vmatpush1.msra.mxu0 0.0
    %83 = vmatprep.subr.mxu0 0.0
    %84 = vmatpush1.msra.mxu0 0.0
    %85 = vmatprep.subr.mxu0 0.0
    %86 = vmatpush1.msra.mxu0 0.0
    %87 = vmatprep.subr.mxu0 0.0
    %88 = vmatpush1.msra.mxu0 0.0
    %89 = vmatprep.subr.mxu0 0.0
    %90 = vmatpush1.msra.mxu0 0.0
    %91 = vmatprep.subr.mxu0 0.0
    %92 = vmatpush1.msra.mxu0 0.0
    %93 = vmatprep.subr.mxu0 0.0
    %94 = vmatpush1.msra.mxu0 0.0
    %95 = vmatprep.subr.mxu0 0.0
    %96 = vmatpush1.msra.mxu0 0.0
    %97 = vmatprep.subr.mxu0 0.0
    %98 = vmatpush1.msra.mxu0 0.0
    %99 = vmatprep.subr.mxu0 0.0
    %100 = vmatpush1.msra.mxu0 0.0
    %101 = vmatprep.subr.mxu0 0.0
    %102 = vmatpush1.msra.mxu0 0.0
    %103 = vmatprep.subr.mxu0 0.0
    %104 = vmatpush1.msra.mxu0 0.0
    %105 = vmatprep.subr.mxu0 0.0
    %106 = vmatpush1.msra.mxu0 0.0
    %107 = vmatprep.subr.mxu0 0.0
    %108 = vmatpush1.msra.mxu0 0.0
    %109 = vmatprep.subr.mxu0 0.0
    %110 = vmatpush1.msra.mxu0 0.0
    %111 = vmatprep.subr.mxu0 0.0
    %112 = vmatpush1.msra.mxu0 0.0
    %113 = vmatprep.subr.mxu0 0.0
    %114 = vmatpush1.msra.mxu0 0.0
    %115 = vmatprep.subr.mxu0 0.0
    %116 = vmatpush1.msra.mxu0 0.0
    %117 = vmatprep.subr.mxu0 0.0
    %118 = vmatpush1.msra.mxu0 0.0
    %119 = vmatprep.subr.mxu0 0.0
    %120 = vmatpush1.msra.mxu0 0.0
    %121 = vmatprep.subr.mxu0 0.0
    %122 = vmatpush1.msra.mxu0 0.0
    %123 = vmatprep.subr.mxu0 0.0
    %124 = vmatpush1.msra.mxu0 0.0
    %125 = vmatprep.mubr.f32.mxu0 0.0
    %126 = vmatmul.mubr.f32.gmra.mrb[0].mxu0 %v59
    %v127 = vpop.f32.mrb[0].mxu0
    %v128 = vadd.f32 %v56, %v127
    %v129 = vpop.f32.mrb[0].mxu0
    %130 = vdwg.mxu0
    %v131 = vmax.f32 %v128, 0.0
    %s132 = scalar_lea.vmem [#allocation2], 32
    %v133 = vld [vmem:[%s132] sm:$0xff]
    %v134 = vld [vmem:[%s132 + $0x8] sm:$0xff]
    %v135 = vld [vmem:[%s132 + $0x10] sm:$0xff]
    %v136 = vld [vmem:[%s132 + $0x18] sm:$0xff]
    %v137 = vld [vmem:[%s2 + $0x3] sm:$0x1]
    %v138 = vlaneseq
    %v139 = vshrl.u32 %v138, 7
    %v140 = vsub.s32 0, %v139
    %v141 = vrot.slane %v137, %v140
    %v143 = vsel %vm57, %v131, 0
    %145 = vmatprep.subr.mxu0 0.0
    %146 = vmatpush1.msra.mxu0 %v133
    %147 = vmatprep.subr.mxu0 0.0
    %148 = vmatpush1.msra.mxu0 %v134
    %149 = vmatprep.subr.mxu0 0.0
    %150 = vmatpush1.msra.mxu0 %v135
    %151 = vmatprep.subr.mxu0 0.0
    %152 = vmatpush1.msra.mxu0 %v136
    %153 = vmatprep.subr.mxu0 0.0
    %154 = vmatpush1.msra.mxu0 0.0
    %155 = vmatprep.subr.mxu0 0.0
    %156 = vmatpush1.msra.mxu0 0.0
    %157 = vmatprep.subr.mxu0 0.0
    %158 = vmatpush1.msra.mxu0 0.0
    %159 = vmatprep.subr.mxu0 0.0
    %160 = vmatpush1.msra.mxu0 0.0
    %161 = vmatprep.subr.mxu0 0.0
    %162 = vmatpush1.msra.mxu0 0.0
    %163 = vmatprep.subr.mxu0 0.0
    %164 = vmatpush1.msra.mxu0 0.0
    %165 = vmatprep.subr.mxu0 0.0
    %166 = vmatpush1.msra.mxu0 0.0
    %167 = vmatprep.subr.mxu0 0.0
    %168 = vmatpush1.msra.mxu0 0.0
    %169 = vmatprep.subr.mxu0 0.0
    %170 = vmatpush1.msra.mxu0 0.0
    %171 = vmatprep.subr.mxu0 0.0
    %172 = vmatpush1.msra.mxu0 0.0
    %173 = vmatprep.subr.mxu0 0.0
    %174 = vmatpush1.msra.mxu0 0.0
    %175 = vmatprep.subr.mxu0 0.0
    %176 = vmatpush1.msra.mxu0 0.0
    %177 = vmatprep.subr.mxu0 0.0
    %178 = vmatpush1.msra.mxu0 0.0
    %179 = vmatprep.subr.mxu0 0.0
    %180 = vmatpush1.msra.mxu0 0.0
    %181 = vmatprep.subr.mxu0 0.0
    %182 = vmatpush1.msra.mxu0 0.0
    %183 = vmatprep.subr.mxu0 0.0
    %184 = vmatpush1.msra.mxu0 0.0
    %185 = vmatprep.subr.mxu0 0.0
    %186 = vmatpush1.msra.mxu0 0.0
    %187 = vmatprep.subr.mxu0 0.0
    %188 = vmatpush1.msra.mxu0 0.0
    %189 = vmatprep.subr.mxu0 0.0
    %190 = vmatpush1.msra.mxu0 0.0
    %191 = vmatprep.subr.mxu0 0.0
    %192 = vmatpush1.msra.mxu0 0.0
    %193 = vmatprep.subr.mxu0 0.0
    %194 = vmatpush1.msra.mxu0 0.0
    %195 = vmatprep.subr.mxu0 0.0
    %196 = vmatpush1.msra.mxu0 0.0
    %197 = vmatprep.subr.mxu0 0.0
    %198 = vmatpush1.msra.mxu0 0.0
    %199 = vmatprep.subr.mxu0 0.0
    %200 = vmatpush1.msra.mxu0 0.0
    %201 = vmatprep.subr.mxu0 0.0
    %202 = vmatpush1.msra.mxu0 0.0
    %203 = vmatprep.subr.mxu0 0.0
    %204 = vmatpush1.msra.mxu0 0.0
    %205 = vmatprep.subr.mxu0 0.0
    %206 = vmatpush1.msra.mxu0 0.0
    %207 = vmatprep.subr.mxu0 0.0
    %208 = vmatpush1.msra.mxu0 0.0
    %209 = vmatprep.mubr.f32.mxu0 0.0
    %210 = vmatmul.mubr.f32.gmra.mrb[0].mxu0 %v143
    %v211 = vpop.f32.mrb[0].mxu0
    %v212 = vadd.f32 %v141, %v211
    %v213 = vpop.f32.mrb[0].mxu0
    %214 = vdwg.mxu0
    %v215 = vmax.f32 %v212, 0.0
    %v216 = vld [vmem:[%s2 + $0x4] sm:$0x1]
    %v217 = vld [vmem:[%s2 + $0x5] sm:$0x1]
    %219 = vset.pattern.permute.xlu0 0
    %220 = vperm.xlu0 %219, %v217
    %v221 = vpop.permute.xlu0 %220
    %v224 = vsel %vm57, %v216, 0
    %v227 = vsel %vm57, %v215, 0
    %229 = vmatprep.subr.mxu0 0.0
    %230 = vmatpush1.xpose.msra.mxu0 %v227
    %231 = vmatprep.subr.mxu0 0.0
    %232 = vmatpush1.xpose.msra.mxu0 0.0
    %233 = vmatprep.subr.mxu0 0.0
    %234 = vmatpush1.xpose.msra.mxu0 0.0
    %235 = vmatprep.subr.mxu0 0.0
    %236 = vmatpush1.xpose.msra.mxu0 0.0
    %237 = vmatprep.subr.mxu0 0.0
    %238 = vmatpush1.xpose.msra.mxu0 0.0
    %239 = vmatprep.subr.mxu0 0.0
    %240 = vmatpush1.xpose.msra.mxu0 0.0
    %241 = vmatprep.subr.mxu0 0.0
    %242 = vmatpush1.xpose.msra.mxu0 0.0
    %243 = vmatprep.subr.mxu0 0.0
    %244 = vmatpush1.xpose.msra.mxu0 0.0
    %245 = vmatprep.subr.mxu0 0.0
    %246 = vmatpush1.xpose.msra.mxu0 0.0
    %247 = vmatprep.subr.mxu0 0.0
    %248 = vmatpush1.xpose.msra.mxu0 0.0
    %249 = vmatprep.subr.mxu0 0.0
    %250 = vmatpush1.xpose.msra.mxu0 0.0
    %251 = vmatprep.subr.mxu0 0.0
    %252 = vmatpush1.xpose.msra.mxu0 0.0
    %253 = vmatprep.subr.mxu0 0.0
    %254 = vmatpush1.xpose.msra.mxu0 0.0
    %255 = vmatprep.subr.mxu0 0.0
    %256 = vmatpush1.xpose.msra.mxu0 0.0
    %257 = vmatprep.subr.mxu0 0.0
    %258 = vmatpush1.xpose.msra.mxu0 0.0
    %259 = vmatprep.subr.mxu0 0.0
    %260 = vmatpush1.xpose.msra.mxu0 0.0
    %261 = vmatprep.subr.mxu0 0.0
    %262 = vmatpush1.xpose.msra.mxu0 0.0
    %263 = vmatprep.subr.mxu0 0.0
    %264 = vmatpush1.xpose.msra.mxu0 0.0
    %265 = vmatprep.subr.mxu0 0.0
    %266 = vmatpush1.xpose.msra.mxu0 0.0
    %267 = vmatprep.subr.mxu0 0.0
    %268 = vmatpush1.xpose.msra.mxu0 0.0
    %269 = vmatprep.subr.mxu0 0.0
    %270 = vmatpush1.xpose.msra.mxu0 0.0
    %271 = vmatprep.subr.mxu0 0.0
    %272 = vmatpush1.xpose.msra.mxu0 0.0
    %273 = vmatprep.subr.mxu0 0.0
    %274 = vmatpush1.xpose.msra.mxu0 0.0
    %275 = vmatprep.subr.mxu0 0.0
    %276 = vmatpush1.xpose.msra.mxu0 0.0
    %277 = vmatprep.subr.mxu0 0.0
    %278 = vmatpush1.xpose.msra.mxu0 0.0
    %279 = vmatprep.subr.mxu0 0.0
    %280 = vmatpush1.xpose.msra.mxu0 0.0
    %281 = vmatprep.subr.mxu0 0.0
    %282 = vmatpush1.xpose.msra.mxu0 0.0
    %283 = vmatprep.subr.mxu0 0.0
    %284 = vmatpush1.xpose.msra.mxu0 0.0
    %285 = vmatprep.subr.mxu0 0.0
    %286 = vmatpush1.xpose.msra.mxu0 0.0
    %287 = vmatprep.subr.mxu0 0.0
    %288 = vmatpush1.xpose.msra.mxu0 0.0
    %289 = vmatprep.subr.mxu0 0.0
    %290 = vmatpush1.xpose.msra.mxu0 0.0
    %291 = vmatprep.subr.mxu0 0.0
    %292 = vmatpush1.xpose.msra.mxu0 0.0
    %293 = vmatprep.mubr.f32.mxu0 0.0
    %294 = vmatmul.mubr.f32.gmra.mrb[0].mxu0 %v224
    %v295 = vpop.f32.mrb[0].mxu0
    %v296 = vadd.f32 %v221, %v295
    %v297 = vpop.f32.mrb[0].mxu0
    %298 = vdwg.mxu0
    %vm299 = vcmask 57344
    %300 = vst.msk [vmem:[#allocation5] sm:$0x1] %vm299, %v296
    // Predicated region
    $region18: #{regression_model_forward.1} parent=1 // pred_check
      _
    $region19: #{regression_model_forward.1} parent=1 // pred_check_branch
      %302 = sbr.rel (0) target = $region21
    $region20: #{regression_model_forward.1} parent=1 // pred_region
      %s304 = ssub.s32 16, 16
      %305 = vsyncadd [#allocation4], %s304
      %s307 = sshll.u32 [#allocation5], 4
      %s308 = int_to_ptr.vmem [resolvable:$true] %s307
      %310 = dma.vmem_to_hbm [thread:$0]  %s308, 16, %s3, [#allocation4]
    $region21: #{regression_model_forward.1} parent=1 // pred_fallthru
      _
    // Predicated region
    $region22: #{regression_model_forward.1} parent=1 // pred_check
      _
    $region23: #{regression_model_forward.1} parent=1 // pred_check_branch
      %312 = sbr.rel (0) target = $region25
    $region24: #{regression_model_forward.1} parent=1 // pred_region
      %313 = dma.done [#allocation4], 16
    $region25: #{regression_model_forward.1} parent=1 // pred_fallthru
      _
    %314 = vsyncpa [#allocation3], 1
    %315 = vsyncpa [#allocation4], 1

</llo_original>
